<compile_context>
chip_gen: v7x
topology: tpu7x:2x2x1
jax: 0.10.0
libtpu: 0.0.40
codegen_flags: <defaults>
</compile_context>

<pallas_src>
import math

import jax
import jax.numpy as jnp
from jax.experimental import pallas as pl
from jax.experimental.pallas import tpu as pltpu


# -----------------------------------------------------------------------------
# Fused Pallas forward
# -----------------------------------------------------------------------------
def _center_set_pallas(pre_mats, post_mats, embeds, offsets, *,
                       use_offset, agg, block_rows=512):
    """Fused CenterSet forward.

    embeds  : list of 2 or 3 arrays, each [B, E]
    offsets : list of same length (only used when use_offset=True), each [B, E]
    pre_mats: [2E, M] if use_offset else [E, M]
    post_mats: [M, E_out]
    returns : [B, E_out] in embeds[0].dtype
    """
    n = len(embeds)
    B, E = embeds[0].shape
    M = pre_mats.shape[1]
    E_out = post_mats.shape[1]
    out_dtype = embeds[0].dtype

    # Row-tile selection: whole batch as a single block when small (one grid
    # step, zero per-step overhead); otherwise 512-row tiles — big enough to
    # sit on the HBM roofline, small enough that double-buffered blocks of all
    # streams stay well under the 16/32/32 MiB scoped-VMEM ceilings
    # (v5e/v6e/v7x), and a multiple of 32 so any dtype's sublane tiling is
    # unpadded.
    if B <= block_rows:
        bb = B
    else:
        bb = block_rows
    nblk = pl.cdiv(B, bb)

    # Assemble inputs and their BlockSpecs.
    emb_spec = pl.BlockSpec((bb, E), lambda i: (i, 0))
    inputs, in_specs = [], []
    for k in range(n):
        inputs.append(embeds[k])
        in_specs.append(emb_spec)
        if use_offset:
            inputs.append(offsets[k])
            in_specs.append(emb_spec)
    inputs += [pre_mats, post_mats]
    in_specs += [
        pl.BlockSpec(pre_mats.shape, lambda i: (0, 0)),   # resident weights
        pl.BlockSpec(post_mats.shape, lambda i: (0, 0)),  # resident weights
    ]
    out_spec = pl.BlockSpec((bb, E_out), lambda i: (i, 0))

    def kernel(*refs):
        *in_refs, out_ref = refs
        pre_ref, post_ref = in_refs[-2], in_refs[-1]
        emb_refs = in_refs[:-2]

        w_pre = pre_ref[...]
        if use_offset:
            # cat([e, e_o], 1) @ W  ==  e @ W[:E] + e_o @ W[E:]
            w_top = w_pre[:E, :]
            w_bot = w_pre[E:, :]

        hiddens = []
        for k in range(n):
            if use_offset:
                e = emb_refs[2 * k][...]
                eo = emb_refs[2 * k + 1][...]
                h = (jnp.dot(e, w_top, preferred_element_type=jnp.float32)
                     + jnp.dot(eo, w_bot, preferred_element_type=jnp.float32))
            else:
                e = emb_refs[k][...]
                h = jnp.dot(e, w_pre, preferred_element_type=jnp.float32)
            hiddens.append(jnp.maximum(h, 0.0))  # ReLU, f32

        combined = hiddens[0]
        if agg == "min":
            for h in hiddens[1:]:
                combined = jnp.minimum(combined, h)
        elif agg == "max":
            for h in hiddens[1:]:
                combined = jnp.maximum(combined, h)
        elif agg in ("mean", "sum"):
            for h in hiddens[1:]:
                combined = combined + h
            if agg == "mean":
                combined = combined * (1.0 / n)
        else:
            raise ValueError(f"unsupported agg '{agg}'")

        w_post = post_ref[...]
        out = jnp.dot(combined.astype(w_post.dtype), w_post,
                      preferred_element_type=jnp.float32)
        out_ref[...] = out.astype(out_ref.dtype)

    return pl.pallas_call(
        kernel,
        out_shape=jax.ShapeDtypeStruct((B, E_out), out_dtype),
        grid=(nblk,),
        in_specs=in_specs,
        out_specs=out_spec,
        compiler_params=pltpu.CompilerParams(
            dimension_semantics=("parallel",),
        ),
    )(*inputs)


def _has_data(x):
    if hasattr(x, "shape"):
        return x.size > 0
    return len(x) > 0


# -----------------------------------------------------------------------------
# Module wrapper (JAX port of the PyTorch CenterSet; manifold unused in fwd)
# -----------------------------------------------------------------------------
class CenterSet:
    def __init__(self, manifold, mode_dims, expand_dims, center_use_offset,
                 agg_func="min", bn="no", nat=1, name="Real_center",
                 key=None, dtype=jnp.float32):
        assert nat == 1, "vanilla method only support 1 nat now"
        if bn != "no":
            # TODO(synk): BatchNorm1d ('before'/'after') not implemented.
            raise NotImplementedError("only bn='no' is supported")
        self.manifold = manifold
        self.center_use_offset = center_use_offset
        self.agg_func = agg_func  # 'min' (default, = torch.min) | 'max' | 'mean' | 'sum'
        self.bn = bn
        self.nat = nat

        key = jax.random.PRNGKey(0) if key is None else key
        k1, k2 = jax.random.split(key)
        in_dim = expand_dims * 2 if center_use_offset else expand_dims

        def xavier_uniform(k, shape):
            bound = math.sqrt(6.0 / (shape[0] + shape[1]))
            return jax.random.uniform(k, shape, dtype, -bound, bound)

        self.pre_mats = xavier_uniform(k1, (in_dim, mode_dims))
        self.post_mats = xavier_uniform(k2, (mode_dims, expand_dims))

    def __call__(self, embeds1, embeds1_o, embeds2, embeds2_o,
                 embeds3=(), embeds3_o=()):
        embeds = [embeds1, embeds2]
        offs = [embeds1_o, embeds2_o]
        if _has_data(embeds3):
            embeds.append(jnp.asarray(embeds3))
            offs.append(jnp.asarray(embeds3_o) if _has_data(embeds3_o) else None)
        return _center_set_pallas(
            self.pre_mats, self.post_mats, embeds, offs,
            use_offset=self.center_use_offset, agg=self.agg_func)


# -----------------------------------------------------------------------------
# Pure-JAX reference (mirrors the PyTorch forward, bn='no')
# -----------------------------------------------------------------------------
def _reference(pre, post, embeds, offs, use_offset, agg):
    temps = []
    for k, e in enumerate(embeds):
        t = jnp.concatenate([e, offs[k]], axis=1) if use_offset else e
        temps.append(jax.nn.relu(t @ pre))
    stacked = jnp.stack(temps, axis=0)
    if agg == "min":
        c = jnp.min(stacked, axis=0)
    elif agg == "max":
        c = jnp.max(stacked, axis=0)
    elif agg == "mean":
        c = jnp.mean(stacked, axis=0)
    else:
        c = jnp.sum(stacked, axis=0)
    return c @ post


if __name__ == "__main__":
    key = jax.random.PRNGKey(0)
    ks = jax.random.split(key, 8)

    B = 16            # batch
    EXPAND = 32       # embedding dim (input / output of the block)
    MODE = 64         # hidden dim

    embeds1 = jax.random.normal(ks[0], (B, EXPAND), dtype=jnp.float32)
    embeds1_o = jax.random.normal(ks[1], (B, EXPAND), dtype=jnp.float32)
    embeds2 = jax.random.normal(ks[2], (B, EXPAND), dtype=jnp.float32)
    embeds2_o = jax.random.normal(ks[3], (B, EXPAND), dtype=jnp.float32)
    embeds3 = jax.random.normal(ks[4], (B, EXPAND), dtype=jnp.float32)
    embeds3_o = jax.random.normal(ks[5], (B, EXPAND), dtype=jnp.float32)

    # --- config 1: center_use_offset=True, default agg (min), 3 inputs -------
    cs_off = CenterSet("euclidean", MODE, EXPAND, center_use_offset=True,
                       agg_func="min", key=ks[6])
    out1 = cs_off(embeds1, embeds1_o, embeds2, embeds2_o, embeds3, embeds3_o)
    jax.block_until_ready(out1)
    ref1 = _reference(cs_off.pre_mats, cs_off.post_mats,
                      [embeds1, embeds2, embeds3],
                      [embeds1_o, embeds2_o, embeds3_o],
                      use_offset=True, agg="min")
    assert out1.shape == (B, EXPAND) and out1.dtype == embeds1.dtype
    assert jnp.allclose(out1, ref1, atol=5e-3, rtol=5e-3), \
        f"max abs diff {jnp.max(jnp.abs(out1 - ref1))}"

    # --- config 2: center_use_offset=False, agg=min, 2 inputs ----------------
    cs_plain = CenterSet("euclidean", MODE, EXPAND, center_use_offset=False,
                         agg_func="min", key=ks[7])
    out2 = cs_plain(embeds1, embeds1_o, embeds2, embeds2_o)
    jax.block_until_ready(out2)
    ref2 = _reference(cs_plain.pre_mats, cs_plain.post_mats,
                      [embeds1, embeds2], [None, None],
                      use_offset=False, agg="min")
    assert out2.shape == (B, EXPAND) and out2.dtype == embeds1.dtype
    assert jnp.allclose(out2, ref2, atol=5e-3, rtol=5e-3), \
        f"max abs diff {jnp.max(jnp.abs(out2 - ref2))}"

    # --- config 3: mean aggregation, offsets, 2 inputs ------------------------
    cs_mean = CenterSet("euclidean", MODE, EXPAND, center_use_offset=True,
                        agg_func="mean", key=ks[6])
    out3 = cs_mean(embeds1, embeds1_o, embeds2, embeds2_o)
    jax.block_until_ready(out3)
    ref3 = _reference(cs_mean.pre_mats, cs_mean.post_mats,
                      [embeds1, embeds2], [embeds1_o, embeds2_o],
                      use_offset=True, agg="mean")
    assert jnp.allclose(out3, ref3, atol=5e-3, rtol=5e-3), \
        f"max abs diff {jnp.max(jnp.abs(out3 - ref3))}"

    print("KERNEL_OK")
</pallas_src>

<mosaic_0001>
module attributes {stable_mosaic.version = 11 : i64} {
  func.func @kernel(%arg0: i32, %arg1: memref<16x32xf32, #tpu.memory_space<vmem>>, %arg2: memref<16x32xf32, #tpu.memory_space<vmem>>, %arg3: memref<16x32xf32, #tpu.memory_space<vmem>>, %arg4: memref<16x32xf32, #tpu.memory_space<vmem>>, %arg5: memref<16x32xf32, #tpu.memory_space<vmem>>, %arg6: memref<16x32xf32, #tpu.memory_space<vmem>>, %arg7: memref<64x64xf32, #tpu.memory_space<vmem>>, %arg8: memref<64x32xf32, #tpu.memory_space<vmem>>, %arg9: memref<16x32xf32, #tpu.memory_space<vmem>>) attributes {dimension_semantics = [#tpu.dimension_semantics<parallel>], iteration_bounds = array<i64: 1>, scalar_prefetch = 0 : i64, scratch_operands = 0 : i64, tpu.core_type = #tpu.core_type<tc>, window_params = [{transform_indices = @transform_0, window_bounds = array<i64: 16, 32>}, {transform_indices = @transform_1, window_bounds = array<i64: 16, 32>}, {transform_indices = @transform_2, window_bounds = array<i64: 16, 32>}, {transform_indices = @transform_3, window_bounds = array<i64: 16, 32>}, {transform_indices = @transform_4, window_bounds = array<i64: 16, 32>}, {transform_indices = @transform_5, window_bounds = array<i64: 16, 32>}, {pipeline_mode = #tpu.pipeline_mode<synchronous>, transform_indices = @transform_6, window_bounds = array<i64: 64, 64>}, {pipeline_mode = #tpu.pipeline_mode<synchronous>, transform_indices = @transform_7, window_bounds = array<i64: 64, 32>}, {transform_indices = @transform_8, window_bounds = array<i64: 16, 32>}]} {
    %c0 = arith.constant 0 : index
    %c0_0 = arith.constant 0 : index
    %0 = vector.load %arg7[%c0, %c0_0] : memref<64x64xf32, #tpu.memory_space<vmem>>, vector<64x64xf32>
    %1 = vector.extract_strided_slice %0 {offsets = [0, 0], sizes = [32, 64], strides = [1, 1]} : vector<64x64xf32> to vector<32x64xf32>
    %2 = vector.extract_strided_slice %0 {offsets = [32, 0], sizes = [32, 64], strides = [1, 1]} : vector<64x64xf32> to vector<32x64xf32>
    %c0_1 = arith.constant 0 : index
    %c0_2 = arith.constant 0 : index
    %3 = vector.load %arg1[%c0_1, %c0_2] : memref<16x32xf32, #tpu.memory_space<vmem>>, vector<16x32xf32>
    %c0_3 = arith.constant 0 : index
    %c0_4 = arith.constant 0 : index
    %4 = vector.load %arg2[%c0_3, %c0_4] : memref<16x32xf32, #tpu.memory_space<vmem>>, vector<16x32xf32>
    %cst = arith.constant dense<0.000000e+00> : vector<16x64xf32>
    %5 = tpu.matmul %3, %1, %cst {dimension_numbers = #tpu.dot_dimension_numbers<[1], [0], [0], [1], [0, 0, 1, 1], [], []>} : vector<16x32xf32>, vector<32x64xf32>, vector<16x64xf32> -> vector<16x64xf32>
    %cst_5 = arith.constant dense<0.000000e+00> : vector<16x64xf32>
    %6 = tpu.matmul %4, %2, %cst_5 {dimension_numbers = #tpu.dot_dimension_numbers<[1], [0], [0], [1], [0, 0, 1, 1], [], []>} : vector<16x32xf32>, vector<32x64xf32>, vector<16x64xf32> -> vector<16x64xf32>
    %7 = arith.addf %5, %6 : vector<16x64xf32>
    %cst_6 = arith.constant 0.000000e+00 : f32
    %8 = vector.broadcast %cst_6 : f32 to vector<16x64xf32>
    %9 = arith.maximumf %7, %8 : vector<16x64xf32>
    %c0_7 = arith.constant 0 : index
    %c0_8 = arith.constant 0 : index
    %10 = vector.load %arg3[%c0_7, %c0_8] : memref<16x32xf32, #tpu.memory_space<vmem>>, vector<16x32xf32>
    %c0_9 = arith.constant 0 : index
    %c0_10 = arith.constant 0 : index
    %11 = vector.load %arg4[%c0_9, %c0_10] : memref<16x32xf32, #tpu.memory_space<vmem>>, vector<16x32xf32>
    %cst_11 = arith.constant dense<0.000000e+00> : vector<16x64xf32>
    %12 = tpu.matmul %10, %1, %cst_11 {dimension_numbers = #tpu.dot_dimension_numbers<[1], [0], [0], [1], [0, 0, 1, 1], [], []>} : vector<16x32xf32>, vector<32x64xf32>, vector<16x64xf32> -> vector<16x64xf32>
    %cst_12 = arith.constant dense<0.000000e+00> : vector<16x64xf32>
    %13 = tpu.matmul %11, %2, %cst_12 {dimension_numbers = #tpu.dot_dimension_numbers<[1], [0], [0], [1], [0, 0, 1, 1], [], []>} : vector<16x32xf32>, vector<32x64xf32>, vector<16x64xf32> -> vector<16x64xf32>
    %14 = arith.addf %12, %13 : vector<16x64xf32>
    %cst_13 = arith.constant 0.000000e+00 : f32
    %15 = vector.broadcast %cst_13 : f32 to vector<16x64xf32>
    %16 = arith.maximumf %14, %15 : vector<16x64xf32>
    %c0_14 = arith.constant 0 : index
    %c0_15 = arith.constant 0 : index
    %17 = vector.load %arg5[%c0_14, %c0_15] : memref<16x32xf32, #tpu.memory_space<vmem>>, vector<16x32xf32>
    %c0_16 = arith.constant 0 : index
    %c0_17 = arith.constant 0 : index
    %18 = vector.load %arg6[%c0_16, %c0_17] : memref<16x32xf32, #tpu.memory_space<vmem>>, vector<16x32xf32>
    %cst_18 = arith.constant dense<0.000000e+00> : vector<16x64xf32>
    %19 = tpu.matmul %17, %1, %cst_18 {dimension_numbers = #tpu.dot_dimension_numbers<[1], [0], [0], [1], [0, 0, 1, 1], [], []>} : vector<16x32xf32>, vector<32x64xf32>, vector<16x64xf32> -> vector<16x64xf32>
    %cst_19 = arith.constant dense<0.000000e+00> : vector<16x64xf32>
    %20 = tpu.matmul %18, %2, %cst_19 {dimension_numbers = #tpu.dot_dimension_numbers<[1], [0], [0], [1], [0, 0, 1, 1], [], []>} : vector<16x32xf32>, vector<32x64xf32>, vector<16x64xf32> -> vector<16x64xf32>
    %21 = arith.addf %19, %20 : vector<16x64xf32>
    %cst_20 = arith.constant 0.000000e+00 : f32
    %22 = vector.broadcast %cst_20 : f32 to vector<16x64xf32>
    %23 = arith.maximumf %21, %22 : vector<16x64xf32>
    %24 = arith.minimumf %9, %16 : vector<16x64xf32>
    %25 = arith.minimumf %24, %23 : vector<16x64xf32>
    %c0_21 = arith.constant 0 : index
    %c0_22 = arith.constant 0 : index
    %26 = vector.load %arg8[%c0_21, %c0_22] : memref<64x32xf32, #tpu.memory_space<vmem>>, vector<64x32xf32>
    %cst_23 = arith.constant dense<0.000000e+00> : vector<16x32xf32>
    %27 = tpu.matmul %25, %26, %cst_23 {dimension_numbers = #tpu.dot_dimension_numbers<[1], [0], [0], [1], [0, 0, 1, 1], [], []>} : vector<16x64xf32>, vector<64x32xf32>, vector<16x32xf32> -> vector<16x32xf32>
    %c0_24 = arith.constant 0 : index
    %c0_25 = arith.constant 0 : index
    %28 = vector.load %arg9[%c0_24, %c0_25] : memref<16x32xf32, #tpu.memory_space<vmem>>, vector<16x32xf32>
    tpu.vector_store %arg9[%c0_24, %c0_25], %27 {strides = array<i32>} : memref<16x32xf32, #tpu.memory_space<vmem>>, vector<16x32xf32>,
    return
  }
  func.func @transform_0(%arg0: i32) -> (i32, i32) {
    %c0_i32 = arith.constant 0 : i32
    %c0_i32_0 = arith.constant 0 : i32
    return %arg0, %c0_i32 : i32, i32
  }
  func.func @transform_1(%arg0: i32) -> (i32, i32) {
    %c0_i32 = arith.constant 0 : i32
    %c0_i32_0 = arith.constant 0 : i32
    return %arg0, %c0_i32 : i32, i32
  }
  func.func @transform_2(%arg0: i32) -> (i32, i32) {
    %c0_i32 = arith.constant 0 : i32
    %c0_i32_0 = arith.constant 0 : i32
    return %arg0, %c0_i32 : i32, i32
  }
  func.func @transform_3(%arg0: i32) -> (i32, i32) {
    %c0_i32 = arith.constant 0 : i32
    %c0_i32_0 = arith.constant 0 : i32
    return %arg0, %c0_i32 : i32, i32
  }
  func.func @transform_4(%arg0: i32) -> (i32, i32) {
    %c0_i32 = arith.constant 0 : i32
    %c0_i32_0 = arith.constant 0 : i32
    return %arg0, %c0_i32 : i32, i32
  }
  func.func @transform_5(%arg0: i32) -> (i32, i32) {
    %c0_i32 = arith.constant 0 : i32
    %c0_i32_0 = arith.constant 0 : i32
    return %arg0, %c0_i32 : i32, i32
  }
  func.func @transform_6(%arg0: i32) -> (i32, i32) {
    %c0_i32 = arith.constant 0 : i32
    %c0_i32_0 = arith.constant 0 : i32
    %c0_i32_1 = arith.constant 0 : i32
    return %c0_i32, %c0_i32_0 : i32, i32
  }
  func.func @transform_7(%arg0: i32) -> (i32, i32) {
    %c0_i32 = arith.constant 0 : i32
    %c0_i32_0 = arith.constant 0 : i32
    %c0_i32_1 = arith.constant 0 : i32
    return %c0_i32, %c0_i32_0 : i32, i32
  }
  func.func @transform_8(%arg0: i32) -> (i32, i32) {
    %c0_i32 = arith.constant 0 : i32
    %c0_i32_0 = arith.constant 0 : i32
    return %arg0, %c0_i32 : i32, i32
  }
}

</mosaic_0001>

<llo_original>
// kernel: tpu_custom_call.1
$region0: #{tpu_custom_call.1}
  #allocation0 [shape = 'u32[]', space=smem, size = 0x4, offset = 0x4, fixed_abs, tag = 'smem constant byte address 0x4 - core index']
  #allocation1 [shape = 'u32[144,128]{1,0:T(1,128)}', space=vmem, size = 0x12000, scoped, tag = 'internal scratch']
  %s0 = inlined_call_operand.vmem [shape: f32[16,32], index: 0, kind: input, shape index: {}]
  %s1 = inlined_call_operand.vmem [shape: f32[16,32], index: 1, kind: input, shape index: {}]
  %s2 = inlined_call_operand.vmem [shape: f32[16,32], index: 2, kind: input, shape index: {}]
  %s3 = inlined_call_operand.hbm [shape: f32[16,32], index: 3, kind: input, shape index: {}]
  %s4 = inlined_call_operand.hbm [shape: f32[16,32], index: 4, kind: input, shape index: {}]
  %s5 = inlined_call_operand.hbm [shape: f32[16,32], index: 5, kind: input, shape index: {}]
  %s6 = inlined_call_operand.vmem [shape: f32[64,64], index: 6, kind: input, shape index: {}]
  %s7 = inlined_call_operand.vmem [shape: f32[64,32], index: 7, kind: input, shape index: {}]
  %s8 = inlined_call_operand.hbm [shape: f32[16,32], index: 8, kind: output, shape index: {}]
  %s9 = sld [smem:[#allocation0]]
  $region54: #{tpu_custom_call.1} parent=0
    _
  %s11 = ssub.s32 1, %s9
  %s12 = scalar_select 0, %s11, %s9
  $region1: #{tpu_custom_call.1} parent=0
    #allocation2 [shape = 'u8[8192]{0}', space=vmem, size = 0x2000, scoped, tag = 'input window, operand 3, single buffered']
    #allocation3 [shape = 's32[1]{0}', space=sflag, size = 0x4, scoped, tag = 'scoped memory for tpu_custom_call.1']
    #allocation4 [shape = 's32[1]{0}', space=sflag, size = 0x4, scoped, tag = 'scoped memory for tpu_custom_call.1']
    #allocation5 [shape = 'u8[8192]{0}', space=vmem, size = 0x2000, scoped, tag = 'input window, operand 4, single buffered']
    #allocation6 [shape = 's32[1]{0}', space=sflag, size = 0x4, scoped, tag = 'scoped memory for tpu_custom_call.1']
    #allocation7 [shape = 'u8[8192]{0}', space=vmem, size = 0x2000, scoped, tag = 'input window, operand 5, single buffered']
    #allocation8 [shape = 'u8[8192]{0}', space=vmem, size = 0x2000, scoped, tag = 'output window, operand 0, single buffered']
    %13 = vsyncpa [#allocation3], 0
    %14 = vsyncpa [#allocation6], 0
    %15 = vsyncpa [#allocation4], 0
    // Predicated region
    $region2: #{tpu_custom_call.1} parent=1 // pred_check
      _
    $region3: #{tpu_custom_call.1} parent=1 // pred_check_branch
      %17 = sbr.rel (0) target = $region5
    $region4: #{tpu_custom_call.1} parent=1 // pred_region
      _
    $region5: #{tpu_custom_call.1} parent=1 // pred_fallthru
      _
    // Predicated region
    $region6: #{tpu_custom_call.1} parent=1 // pred_check
      _
    $region7: #{tpu_custom_call.1} parent=1 // pred_check_branch
      %19 = sbr.rel (0) target = $region9
    $region8: #{tpu_custom_call.1} parent=1 // pred_region
      _
    $region9: #{tpu_custom_call.1} parent=1 // pred_fallthru
      _
    // Predicated region
    $region10: #{tpu_custom_call.1} parent=1 // pred_check
      _
    $region11: #{tpu_custom_call.1} parent=1 // pred_check_branch
      %21 = sbr.rel (0) target = $region13
    $region12: #{tpu_custom_call.1} parent=1 // pred_region
      _
    $region13: #{tpu_custom_call.1} parent=1 // pred_fallthru
      _
    // Predicated region
    $region14: #{tpu_custom_call.1} parent=1 // pred_check
      _
    $region15: #{tpu_custom_call.1} parent=1 // pred_check_branch
      %23 = sbr.rel (0) target = $region17
    $region16: #{tpu_custom_call.1} parent=1 // pred_region
      %s25 = ssub.s32 256, 256
      %26 = vsyncadd [#allocation3], %s25
      %s27 = sshll.u32 [#allocation2], 4
      %s28 = int_to_ptr.vmem [resolvable:$true] %s27
      %33 = dma.hbm_to_vmem [thread:$0]  %s3, 256, %s28, [#allocation3], 128, 128, 8
    $region17: #{tpu_custom_call.1} parent=1 // pred_fallthru
      _
    // Predicated region
    $region18: #{tpu_custom_call.1} parent=1 // pred_check
      _
    $region19: #{tpu_custom_call.1} parent=1 // pred_check_branch
      %35 = sbr.rel (0) target = $region21
    $region20: #{tpu_custom_call.1} parent=1 // pred_region
      %s37 = ssub.s32 256, 256
      %38 = vsyncadd [#allocation6], %s37
      %s39 = sshll.u32 [#allocation5], 4
      %s40 = int_to_ptr.vmem [resolvable:$true] %s39
      %45 = dma.hbm_to_vmem [thread:$0]  %s4, 256, %s40, [#allocation6], 128, 128, 8
    $region21: #{tpu_custom_call.1} parent=1 // pred_fallthru
      _
    // Predicated region
    $region22: #{tpu_custom_call.1} parent=1 // pred_check
      _
    $region23: #{tpu_custom_call.1} parent=1 // pred_check_branch
      %47 = sbr.rel (0) target = $region25
    $region24: #{tpu_custom_call.1} parent=1 // pred_region
      %s49 = ssub.s32 256, 256
      %50 = vsyncadd [#allocation6], %s49
      %s51 = sshll.u32 [#allocation7], 4
      %s52 = int_to_ptr.vmem [resolvable:$true] %s51
      %57 = dma.hbm_to_vmem [thread:$0]  %s5, 256, %s52, [#allocation6], 128, 128, 8
    $region25: #{tpu_custom_call.1} parent=1 // pred_fallthru
      _
    // Predicated region
    $region26: #{tpu_custom_call.1} parent=1 // pred_check
      _
    $region27: #{tpu_custom_call.1} parent=1 // pred_check_branch
      %59 = sbr.rel (0) target = $region29
    $region28: #{tpu_custom_call.1} parent=1 // pred_region
      _
    $region29: #{tpu_custom_call.1} parent=1 // pred_fallthru
      _
    // Predicated region
    $region30: #{tpu_custom_call.1} parent=1 // pred_check
      _
    $region31: #{tpu_custom_call.1} parent=1 // pred_check_branch
      %61 = sbr.rel (0) target = $region33
    $region32: #{tpu_custom_call.1} parent=1 // pred_region
      _
    $region33: #{tpu_custom_call.1} parent=1 // pred_fallthru
      _
    // Predicated region
    $region34: #{tpu_custom_call.1} parent=1 // pred_check
      _
    $region35: #{tpu_custom_call.1} parent=1 // pred_check_branch
      %63 = sbr.rel (0) target = $region37
    $region36: #{tpu_custom_call.1} parent=1 // pred_region
      %64 = dma.done [#allocation3], 256
    $region37: #{tpu_custom_call.1} parent=1 // pred_fallthru
      _
    // Predicated region
    $region38: #{tpu_custom_call.1} parent=1 // pred_check
      _
    $region39: #{tpu_custom_call.1} parent=1 // pred_check_branch
      %66 = sbr.rel (0) target = $region41
    $region40: #{tpu_custom_call.1} parent=1 // pred_region
      %67 = dma.done [#allocation6], 256
    $region41: #{tpu_custom_call.1} parent=1 // pred_fallthru
      _
    // Predicated region
    $region42: #{tpu_custom_call.1} parent=1 // pred_check
      _
    $region43: #{tpu_custom_call.1} parent=1 // pred_check_branch
      %69 = sbr.rel (0) target = $region45
    $region44: #{tpu_custom_call.1} parent=1 // pred_region
      %70 = dma.done [#allocation6], 256
    $region45: #{tpu_custom_call.1} parent=1 // pred_fallthru
      _
    %v71 = vld [vmem:[%s6] sm:$0xff]
    %v72 = vld [vmem:[%s6 + $0x8] sm:$0xff]
    %v73 = vld [vmem:[%s6 + $0x10] sm:$0xff]
    %v74 = vld [vmem:[%s6 + $0x18] sm:$0xff]
    %v75 = vld [vmem:[%s6 + $0x20] sm:$0xff]
    %v76 = vld [vmem:[%s6 + $0x28] sm:$0xff]
    %v77 = vld [vmem:[%s6 + $0x30] sm:$0xff]
    %v78 = vld [vmem:[%s6 + $0x38] sm:$0xff]
    %v79 = vld [vmem:[%s0] sm:$0xff]
    %v80 = vld [vmem:[%s0 + $0x8] sm:$0xff]
    %v81 = vld [vmem:[%s1] sm:$0xff]
    %v82 = vld [vmem:[%s1 + $0x8] sm:$0xff]
    %vm83 = vcmask 261120
    %v85 = vsel %vm83, %v81, 0
    %v88 = vsel %vm83, %v82, 0
    %90 = vmatprep.subr.mxu0 0.0
    %91 = vmatpush1.msra.mxu0 %v75
    %92 = vmatprep.subr.mxu0 0.0
    %93 = vmatpush1.msra.mxu0 %v76
    %94 = vmatprep.subr.mxu0 0.0
    %95 = vmatpush1.msra.mxu0 %v77
    %96 = vmatprep.subr.mxu0 0.0
    %97 = vmatpush1.msra.mxu0 %v78
    %98 = vmatprep.subr.mxu0 0.0
    %99 = vmatpush1.msra.mxu0 0.0
    %100 = vmatprep.subr.mxu0 0.0
    %101 = vmatpush1.msra.mxu0 0.0
    %102 = vmatprep.subr.mxu0 0.0
    %103 = vmatpush1.msra.mxu0 0.0
    %104 = vmatprep.subr.mxu0 0.0
    %105 = vmatpush1.msra.mxu0 0.0
    %106 = vmatprep.subr.mxu0 0.0
    %107 = vmatpush1.msra.mxu0 0.0
    %108 = vmatprep.subr.mxu0 0.0
    %109 = vmatpush1.msra.mxu0 0.0
    %110 = vmatprep.subr.mxu0 0.0
    %111 = vmatpush1.msra.mxu0 0.0
    %112 = vmatprep.subr.mxu0 0.0
    %113 = vmatpush1.msra.mxu0 0.0
    %114 = vmatprep.subr.mxu0 0.0
    %115 = vmatpush1.msra.mxu0 0.0
    %116 = vmatprep.subr.mxu0 0.0
    %117 = vmatpush1.msra.mxu0 0.0
    %118 = vmatprep.subr.mxu0 0.0
    %119 = vmatpush1.msra.mxu0 0.0
    %120 = vmatprep.subr.mxu0 0.0
    %121 = vmatpush1.msra.mxu0 0.0
    %122 = vmatprep.subr.mxu0 0.0
    %123 = vmatpush1.msra.mxu0 0.0
    %124 = vmatprep.subr.mxu0 0.0
    %125 = vmatpush1.msra.mxu0 0.0
    %126 = vmatprep.subr.mxu0 0.0
    %127 = vmatpush1.msra.mxu0 0.0
    %128 = vmatprep.subr.mxu0 0.0
    %129 = vmatpush1.msra.mxu0 0.0
    %130 = vmatprep.subr.mxu0 0.0
    %131 = vmatpush1.msra.mxu0 0.0
    %132 = vmatprep.subr.mxu0 0.0
    %133 = vmatpush1.msra.mxu0 0.0
    %134 = vmatprep.subr.mxu0 0.0
    %135 = vmatpush1.msra.mxu0 0.0
    %136 = vmatprep.subr.mxu0 0.0
    %137 = vmatpush1.msra.mxu0 0.0
    %138 = vmatprep.subr.mxu0 0.0
    %139 = vmatpush1.msra.mxu0 0.0
    %140 = vmatprep.subr.mxu0 0.0
    %141 = vmatpush1.msra.mxu0 0.0
    %142 = vmatprep.subr.mxu0 0.0
    %143 = vmatpush1.msra.mxu0 0.0
    %144 = vmatprep.subr.mxu0 0.0
    %145 = vmatpush1.msra.mxu0 0.0
    %146 = vmatprep.subr.mxu0 0.0
    %147 = vmatpush1.msra.mxu0 0.0
    %148 = vmatprep.subr.mxu0 0.0
    %149 = vmatpush1.msra.mxu0 0.0
    %150 = vmatprep.subr.mxu0 0.0
    %151 = vmatpush1.msra.mxu0 0.0
    %152 = vmatprep.subr.mxu0 0.0
    %153 = vmatpush1.msra.mxu0 0.0
    %154 = vmatprep.mubr.f32.mxu0 0.0
    %155 = vmatmul.mubr.f32.gmra.mrb[0].mxu0 %v85
    %v156 = vpop.f32.mrb[0].mxu0
    %v157 = vadd.f32 0.0, %v156
    %v158 = vpop.f32.mrb[0].mxu0
    %159 = vmatprep.mubr.f32.mxu0 0.0
    %160 = vmatmul.mubr.f32.gmra.mrb[0].mxu0 %v88
    %v161 = vpop.f32.mrb[0].mxu0
    %v162 = vadd.f32 0.0, %v161
    %v163 = vpop.f32.mrb[0].mxu0
    %164 = vdwg.mxu0
    %v166 = vsel %vm83, %v79, 0
    %v169 = vsel %vm83, %v80, 0
    %171 = vmatprep.subr.mxu0 0.0
    %172 = vmatpush1.msra.mxu0 %v71
    %173 = vmatprep.subr.mxu0 0.0
    %174 = vmatpush1.msra.mxu0 %v72
    %175 = vmatprep.subr.mxu0 0.0
    %176 = vmatpush1.msra.mxu0 %v73
    %177 = vmatprep.subr.mxu0 0.0
    %178 = vmatpush1.msra.mxu0 %v74
    %179 = vmatprep.subr.mxu0 0.0
    %180 = vmatpush1.msra.mxu0 0.0
    %181 = vmatprep.subr.mxu0 0.0
    %182 = vmatpush1.msra.mxu0 0.0
    %183 = vmatprep.subr.mxu0 0.0
    %184 = vmatpush1.msra.mxu0 0.0
    %185 = vmatprep.subr.mxu0 0.0
    %186 = vmatpush1.msra.mxu0 0.0
    %187 = vmatprep.subr.mxu0 0.0
    %188 = vmatpush1.msra.mxu0 0.0
    %189 = vmatprep.subr.mxu0 0.0
    %190 = vmatpush1.msra.mxu0 0.0
    %191 = vmatprep.subr.mxu0 0.0
    %192 = vmatpush1.msra.mxu0 0.0
    %193 = vmatprep.subr.mxu0 0.0
    %194 = vmatpush1.msra.mxu0 0.0
    %195 = vmatprep.subr.mxu0 0.0
    %196 = vmatpush1.msra.mxu0 0.0
    %197 = vmatprep.subr.mxu0 0.0
    %198 = vmatpush1.msra.mxu0 0.0
    %199 = vmatprep.subr.mxu0 0.0
    %200 = vmatpush1.msra.mxu0 0.0
    %201 = vmatprep.subr.mxu0 0.0
    %202 = vmatpush1.msra.mxu0 0.0
    %203 = vmatprep.subr.mxu0 0.0
    %204 = vmatpush1.msra.mxu0 0.0
    %205 = vmatprep.subr.mxu0 0.0
    %206 = vmatpush1.msra.mxu0 0.0
    %207 = vmatprep.subr.mxu0 0.0
    %208 = vmatpush1.msra.mxu0 0.0
    %209 = vmatprep.subr.mxu0 0.0
    %210 = vmatpush1.msra.mxu0 0.0
    %211 = vmatprep.subr.mxu0 0.0
    %212 = vmatpush1.msra.mxu0 0.0
    %213 = vmatprep.subr.mxu0 0.0
    %214 = vmatpush1.msra.mxu0 0.0
    %215 = vmatprep.subr.mxu0 0.0
    %216 = vmatpush1.msra.mxu0 0.0
    %217 = vmatprep.subr.mxu0 0.0
    %218 = vmatpush1.msra.mxu0 0.0
    %219 = vmatprep.subr.mxu0 0.0
    %220 = vmatpush1.msra.mxu0 0.0
    %221 = vmatprep.subr.mxu0 0.0
    %222 = vmatpush1.msra.mxu0 0.0
    %223 = vmatprep.subr.mxu0 0.0
    %224 = vmatpush1.msra.mxu0 0.0
    %225 = vmatprep.subr.mxu0 0.0
    %226 = vmatpush1.msra.mxu0 0.0
    %227 = vmatprep.subr.mxu0 0.0
    %228 = vmatpush1.msra.mxu0 0.0
    %229 = vmatprep.subr.mxu0 0.0
    %230 = vmatpush1.msra.mxu0 0.0
    %231 = vmatprep.subr.mxu0 0.0
    %232 = vmatpush1.msra.mxu0 0.0
    %233 = vmatprep.subr.mxu0 0.0
    %234 = vmatpush1.msra.mxu0 0.0
    %235 = vmatprep.mubr.f32.mxu0 0.0
    %236 = vmatmul.mubr.f32.gmra.mrb[0].mxu0 %v166
    %v237 = vpop.f32.mrb[0].mxu0
    %v238 = vadd.f32 %v157, %v237
    %v239 = vpop.f32.mrb[0].mxu0
    %240 = vmatprep.mubr.f32.mxu0 0.0
    %241 = vmatmul.mubr.f32.gmra.mrb[0].mxu0 %v169
    %v242 = vpop.f32.mrb[0].mxu0
    %v243 = vadd.f32 %v162, %v242
    %v244 = vpop.f32.mrb[0].mxu0
    %245 = vdwg.mxu0
    %v246 = vmax.f32 %v238, 0.0
    %v247 = vmax.f32 %v243, 0.0
    %v248 = vld [vmem:[%s2] sm:$0xff]
    %v249 = vld [vmem:[%s2 + $0x8] sm:$0xff]
    %v250 = vld [vmem:[#allocation2] sm:$0xff]
    %v251 = vld [vmem:[#allocation2 + $0x8] sm:$0xff]
    %v253 = vsel %vm83, %v250, 0
    %v256 = vsel %vm83, %v251, 0
    %258 = vmatprep.subr.mxu0 0.0
    %259 = vmatpush1.msra.mxu0 %v75
    %260 = vmatprep.subr.mxu0 0.0
    %261 = vmatpush1.msra.mxu0 %v76
    %262 = vmatprep.subr.mxu0 0.0
    %263 = vmatpush1.msra.mxu0 %v77
    %264 = vmatprep.subr.mxu0 0.0
    %265 = vmatpush1.msra.mxu0 %v78
    %266 = vmatprep.subr.mxu0 0.0
    %267 = vmatpush1.msra.mxu0 0.0
    %268 = vmatprep.subr.mxu0 0.0
    %269 = vmatpush1.msra.mxu0 0.0
    %270 = vmatprep.subr.mxu0 0.0
    %271 = vmatpush1.msra.mxu0 0.0
    %272 = vmatprep.subr.mxu0 0.0
    %273 = vmatpush1.msra.mxu0 0.0
    %274 = vmatprep.subr.mxu0 0.0
    %275 = vmatpush1.msra.mxu0 0.0
    %276 = vmatprep.subr.mxu0 0.0
    %277 = vmatpush1.msra.mxu0 0.0
    %278 = vmatprep.subr.mxu0 0.0
    %279 = vmatpush1.msra.mxu0 0.0
    %280 = vmatprep.subr.mxu0 0.0
    %281 = vmatpush1.msra.mxu0 0.0
    %282 = vmatprep.subr.mxu0 0.0
    %283 = vmatpush1.msra.mxu0 0.0
    %284 = vmatprep.subr.mxu0 0.0
    %285 = vmatpush1.msra.mxu0 0.0
    %286 = vmatprep.subr.mxu0 0.0
    %287 = vmatpush1.msra.mxu0 0.0
    %288 = vmatprep.subr.mxu0 0.0
    %289 = vmatpush1.msra.mxu0 0.0
    %290 = vmatprep.subr.mxu0 0.0
    %291 = vmatpush1.msra.mxu0 0.0
    %292 = vmatprep.subr.mxu0 0.0
    %293 = vmatpush1.msra.mxu0 0.0
    %294 = vmatprep.subr.mxu0 0.0
    %295 = vmatpush1.msra.mxu0 0.0
    %296 = vmatprep.subr.mxu0 0.0
    %297 = vmatpush1.msra.mxu0 0.0
    %298 = vmatprep.subr.mxu0 0.0
    %299 = vmatpush1.msra.mxu0 0.0
    %300 = vmatprep.subr.mxu0 0.0
    %301 = vmatpush1.msra.mxu0 0.0
    %302 = vmatprep.subr.mxu0 0.0
    %303 = vmatpush1.msra.mxu0 0.0
    %304 = vmatprep.subr.mxu0 0.0
    %305 = vmatpush1.msra.mxu0 0.0
    %306 = vmatprep.subr.mxu0 0.0
    %307 = vmatpush1.msra.mxu0 0.0
    %308 = vmatprep.subr.mxu0 0.0
    %309 = vmatpush1.msra.mxu0 0.0
    %310 = vmatprep.subr.mxu0 0.0
    %311 = vmatpush1.msra.mxu0 0.0
    %312 = vmatprep.subr.mxu0 0.0
    %313 = vmatpush1.msra.mxu0 0.0
    %314 = vmatprep.subr.mxu0 0.0
    %315 = vmatpush1.msra.mxu0 0.0
    %316 = vmatprep.subr.mxu0 0.0
    %317 = vmatpush1.msra.mxu0 0.0
    %318 = vmatprep.subr.mxu0 0.0
    %319 = vmatpush1.msra.mxu0 0.0
    %320 = vmatprep.subr.mxu0 0.0
    %321 = vmatpush1.msra.mxu0 0.0
    %322 = vmatprep.mubr.f32.mxu0 0.0
    %323 = vmatmul.mubr.f32.gmra.mrb[0].mxu0 %v253
    %v324 = vpop.f32.mrb[0].mxu0
    %v325 = vadd.f32 0.0, %v324
    %v326 = vpop.f32.mrb[0].mxu0
    %327 = vmatprep.mubr.f32.mxu0 0.0
    %328 = vmatmul.mubr.f32.gmra.mrb[0].mxu0 %v256
    %v329 = vpop.f32.mrb[0].mxu0
    %v330 = vadd.f32 0.0, %v329
    %v331 = vpop.f32.mrb[0].mxu0
    %332 = vdwg.mxu0
    %v334 = vsel %vm83, %v248, 0
    %v337 = vsel %vm83, %v249, 0
    %339 = vmatprep.subr.mxu0 0.0
    %340 = vmatpush1.msra.mxu0 %v71
    %341 = vmatprep.subr.mxu0 0.0
    %342 = vmatpush1.msra.mxu0 %v72
    %343 = vmatprep.subr.mxu0 0.0
    %344 = vmatpush1.msra.mxu0 %v73
    %345 = vmatprep.subr.mxu0 0.0
    %346 = vmatpush1.msra.mxu0 %v74
    %347 = vmatprep.subr.mxu0 0.0
    %348 = vmatpush1.msra.mxu0 0.0
    %349 = vmatprep.subr.mxu0 0.0
    %350 = vmatpush1.msra.mxu0 0.0
    %351 = vmatprep.subr.mxu0 0.0
    %352 = vmatpush1.msra.mxu0 0.0
    %353 = vmatprep.subr.mxu0 0.0
    %354 = vmatpush1.msra.mxu0 0.0
    %355 = vmatprep.subr.mxu0 0.0
    %356 = vmatpush1.msra.mxu0 0.0
    %357 = vmatprep.subr.mxu0 0.0
    %358 = vmatpush1.msra.mxu0 0.0
    %359 = vmatprep.subr.mxu0 0.0
    %360 = vmatpush1.msra.mxu0 0.0
    %361 = vmatprep.subr.mxu0 0.0
    %362 = vmatpush1.msra.mxu0 0.0
    %363 = vmatprep.subr.mxu0 0.0
    %364 = vmatpush1.msra.mxu0 0.0
    %365 = vmatprep.subr.mxu0 0.0
    %366 = vmatpush1.msra.mxu0 0.0
    %367 = vmatprep.subr.mxu0 0.0
    %368 = vmatpush1.msra.mxu0 0.0
    %369 = vmatprep.subr.mxu0 0.0
    %370 = vmatpush1.msra.mxu0 0.0
    %371 = vmatprep.subr.mxu0 0.0
    %372 = vmatpush1.msra.mxu0 0.0
    %373 = vmatprep.subr.mxu0 0.0
    %374 = vmatpush1.msra.mxu0 0.0
    %375 = vmatprep.subr.mxu0 0.0
    %376 = vmatpush1.msra.mxu0 0.0
    %377 = vmatprep.subr.mxu0 0.0
    %378 = vmatpush1.msra.mxu0 0.0
    %379 = vmatprep.subr.mxu0 0.0
    %380 = vmatpush1.msra.mxu0 0.0
    %381 = vmatprep.subr.mxu0 0.0
    %382 = vmatpush1.msra.mxu0 0.0
    %383 = vmatprep.subr.mxu0 0.0
    %384 = vmatpush1.msra.mxu0 0.0
    %385 = vmatprep.subr.mxu0 0.0
    %386 = vmatpush1.msra.mxu0 0.0
    %387 = vmatprep.subr.mxu0 0.0
    %388 = vmatpush1.msra.mxu0 0.0
    %389 = vmatprep.subr.mxu0 0.0
    %390 = vmatpush1.msra.mxu0 0.0
    %391 = vmatprep.subr.mxu0 0.0
    %392 = vmatpush1.msra.mxu0 0.0
    %393 = vmatprep.subr.mxu0 0.0
    %394 = vmatpush1.msra.mxu0 0.0
    %395 = vmatprep.subr.mxu0 0.0
    %396 = vmatpush1.msra.mxu0 0.0
    %397 = vmatprep.subr.mxu0 0.0
    %398 = vmatpush1.msra.mxu0 0.0
    %399 = vmatprep.subr.mxu0 0.0
    %400 = vmatpush1.msra.mxu0 0.0
    %401 = vmatprep.subr.mxu0 0.0
    %402 = vmatpush1.msra.mxu0 0.0
    %403 = vmatprep.mubr.f32.mxu0 0.0
    %404 = vmatmul.mubr.f32.gmra.mrb[0].mxu0 %v334
    %v405 = vpop.f32.mrb[0].mxu0
    %v406 = vadd.f32 %v325, %v405
    %v407 = vpop.f32.mrb[0].mxu0
    %408 = vmatprep.mubr.f32.mxu0 0.0
    %409 = vmatmul.mubr.f32.gmra.mrb[0].mxu0 %v337
    %v410 = vpop.f32.mrb[0].mxu0
    %v411 = vadd.f32 %v330, %v410
    %v412 = vpop.f32.mrb[0].mxu0
    %413 = vdwg.mxu0
    %v414 = vmax.f32 %v406, 0.0
    %v415 = vmax.f32 %v411, 0.0
    %v416 = vld [vmem:[#allocation5] sm:$0xff]
    %v417 = vld [vmem:[#allocation5 + $0x8] sm:$0xff]
    %v418 = vld [vmem:[#allocation7] sm:$0xff]
    %v419 = vld [vmem:[#allocation7 + $0x8] sm:$0xff]
    %v421 = vsel %vm83, %v418, 0
    %v424 = vsel %vm83, %v419, 0
    %426 = vmatprep.subr.mxu0 0.0
    %427 = vmatpush1.msra.mxu0 %v75
    %428 = vmatprep.subr.mxu0 0.0
    %429 = vmatpush1.msra.mxu0 %v76
    %430 = vmatprep.subr.mxu0 0.0
    %431 = vmatpush1.msra.mxu0 %v77
    %432 = vmatprep.subr.mxu0 0.0
    %433 = vmatpush1.msra.mxu0 %v78
    %434 = vmatprep.subr.mxu0 0.0
    %435 = vmatpush1.msra.mxu0 0.0
    %436 = vmatprep.subr.mxu0 0.0
    %437 = vmatpush1.msra.mxu0 0.0
    %438 = vmatprep.subr.mxu0 0.0
    %439 = vmatpush1.msra.mxu0 0.0
    %440 = vmatprep.subr.mxu0 0.0
    %441 = vmatpush1.msra.mxu0 0.0
    %442 = vmatprep.subr.mxu0 0.0
    %443 = vmatpush1.msra.mxu0 0.0
    %444 = vmatprep.subr.mxu0 0.0
    %445 = vmatpush1.msra.mxu0 0.0
    %446 = vmatprep.subr.mxu0 0.0
    %447 = vmatpush1.msra.mxu0 0.0
    %448 = vmatprep.subr.mxu0 0.0
    %449 = vmatpush1.msra.mxu0 0.0
    %450 = vmatprep.subr.mxu0 0.0
    %451 = vmatpush1.msra.mxu0 0.0
    %452 = vmatprep.subr.mxu0 0.0
    %453 = vmatpush1.msra.mxu0 0.0
    %454 = vmatprep.subr.mxu0 0.0
    %455 = vmatpush1.msra.mxu0 0.0
    %456 = vmatprep.subr.mxu0 0.0
    %457 = vmatpush1.msra.mxu0 0.0
    %458 = vmatprep.subr.mxu0 0.0
    %459 = vmatpush1.msra.mxu0 0.0
    %460 = vmatprep.subr.mxu0 0.0
    %461 = vmatpush1.msra.mxu0 0.0
    %462 = vmatprep.subr.mxu0 0.0
    %463 = vmatpush1.msra.mxu0 0.0
    %464 = vmatprep.subr.mxu0 0.0
    %465 = vmatpush1.msra.mxu0 0.0
    %466 = vmatprep.subr.mxu0 0.0
    %467 = vmatpush1.msra.mxu0 0.0
    %468 = vmatprep.subr.mxu0 0.0
    %469 = vmatpush1.msra.mxu0 0.0
    %470 = vmatprep.subr.mxu0 0.0
    %471 = vmatpush1.msra.mxu0 0.0
    %472 = vmatprep.subr.mxu0 0.0
    %473 = vmatpush1.msra.mxu0 0.0
    %474 = vmatprep.subr.mxu0 0.0
    %475 = vmatpush1.msra.mxu0 0.0
    %476 = vmatprep.subr.mxu0 0.0
    %477 = vmatpush1.msra.mxu0 0.0
    %478 = vmatprep.subr.mxu0 0.0
    %479 = vmatpush1.msra.mxu0 0.0
    %480 = vmatprep.subr.mxu0 0.0
    %481 = vmatpush1.msra.mxu0 0.0
    %482 = vmatprep.subr.mxu0 0.0
    %483 = vmatpush1.msra.mxu0 0.0
    %484 = vmatprep.subr.mxu0 0.0
    %485 = vmatpush1.msra.mxu0 0.0
    %486 = vmatprep.subr.mxu0 0.0
    %487 = vmatpush1.msra.mxu0 0.0
    %488 = vmatprep.subr.mxu0 0.0
    %489 = vmatpush1.msra.mxu0 0.0
    %490 = vmatprep.mubr.f32.mxu0 0.0
    %491 = vmatmul.mubr.f32.gmra.mrb[0].mxu0 %v421
    %v492 = vpop.f32.mrb[0].mxu0
    %v493 = vadd.f32 0.0, %v492
    %v494 = vpop.f32.mrb[0].mxu0
    %495 = vmatprep.mubr.f32.mxu0 0.0
    %496 = vmatmul.mubr.f32.gmra.mrb[0].mxu0 %v424
    %v497 = vpop.f32.mrb[0].mxu0
    %v498 = vadd.f32 0.0, %v497
    %v499 = vpop.f32.mrb[0].mxu0
    %500 = vdwg.mxu0
    %v502 = vsel %vm83, %v416, 0
    %v505 = vsel %vm83, %v417, 0
    %507 = vmatprep.subr.mxu0 0.0
    %508 = vmatpush1.msra.mxu0 %v71
    %509 = vmatprep.subr.mxu0 0.0
    %510 = vmatpush1.msra.mxu0 %v72
    %511 = vmatprep.subr.mxu0 0.0
    %512 = vmatpush1.msra.mxu0 %v73
    %513 = vmatprep.subr.mxu0 0.0
    %514 = vmatpush1.msra.mxu0 %v74
    %515 = vmatprep.subr.mxu0 0.0
    %516 = vmatpush1.msra.mxu0 0.0
    %517 = vmatprep.subr.mxu0 0.0
    %518 = vmatpush1.msra.mxu0 0.0
    %519 = vmatprep.subr.mxu0 0.0
    %520 = vmatpush1.msra.mxu0 0.0
    %521 = vmatprep.subr.mxu0 0.0
    %522 = vmatpush1.msra.mxu0 0.0
    %523 = vmatprep.subr.mxu0 0.0
    %524 = vmatpush1.msra.mxu0 0.0
    %525 = vmatprep.subr.mxu0 0.0
    %526 = vmatpush1.msra.mxu0 0.0
    %527 = vmatprep.subr.mxu0 0.0
    %528 = vmatpush1.msra.mxu0 0.0
    %529 = vmatprep.subr.mxu0 0.0
    %530 = vmatpush1.msra.mxu0 0.0
    %531 = vmatprep.subr.mxu0 0.0
    %532 = vmatpush1.msra.mxu0 0.0
    %533 = vmatprep.subr.mxu0 0.0
    %534 = vmatpush1.msra.mxu0 0.0
    %535 = vmatprep.subr.mxu0 0.0
    %536 = vmatpush1.msra.mxu0 0.0
    %537 = vmatprep.subr.mxu0 0.0
    %538 = vmatpush1.msra.mxu0 0.0
    %539 = vmatprep.subr.mxu0 0.0
    %540 = vmatpush1.msra.mxu0 0.0
    %541 = vmatprep.subr.mxu0 0.0
    %542 = vmatpush1.msra.mxu0 0.0
    %543 = vmatprep.subr.mxu0 0.0
    %544 = vmatpush1.msra.mxu0 0.0
    %545 = vmatprep.subr.mxu0 0.0
    %546 = vmatpush1.msra.mxu0 0.0
    %547 = vmatprep.subr.mxu0 0.0
    %548 = vmatpush1.msra.mxu0 0.0
    %549 = vmatprep.subr.mxu0 0.0
    %550 = vmatpush1.msra.mxu0 0.0
    %551 = vmatprep.subr.mxu0 0.0
    %552 = vmatpush1.msra.mxu0 0.0
    %553 = vmatprep.subr.mxu0 0.0
    %554 = vmatpush1.msra.mxu0 0.0
    %555 = vmatprep.subr.mxu0 0.0
    %556 = vmatpush1.msra.mxu0 0.0
    %557 = vmatprep.subr.mxu0 0.0
    %558 = vmatpush1.msra.mxu0 0.0
    %559 = vmatprep.subr.mxu0 0.0
    %560 = vmatpush1.msra.mxu0 0.0
    %561 = vmatprep.subr.mxu0 0.0
    %562 = vmatpush1.msra.mxu0 0.0
    %563 = vmatprep.subr.mxu0 0.0
    %564 = vmatpush1.msra.mxu0 0.0
    %565 = vmatprep.subr.mxu0 0.0
    %566 = vmatpush1.msra.mxu0 0.0
    %567 = vmatprep.subr.mxu0 0.0
    %568 = vmatpush1.msra.mxu0 0.0
    %569 = vmatprep.subr.mxu0 0.0
    %570 = vmatpush1.msra.mxu0 0.0
    %571 = vmatprep.mubr.f32.mxu0 0.0
    %572 = vmatmul.mubr.f32.gmra.mrb[0].mxu0 %v502
    %v573 = vpop.f32.mrb[0].mxu0
    %v574 = vadd.f32 %v493, %v573
    %v575 = vpop.f32.mrb[0].mxu0
    %576 = vmatprep.mubr.f32.mxu0 0.0
    %577 = vmatmul.mubr.f32.gmra.mrb[0].mxu0 %v505
    %v578 = vpop.f32.mrb[0].mxu0
    %v579 = vadd.f32 %v498, %v578
    %v580 = vpop.f32.mrb[0].mxu0
    %581 = vdwg.mxu0
    %v582 = vmax.f32 %v574, 0.0
    %v583 = vmax.f32 %v579, 0.0
    %v584 = vmin.f32 %v246, %v414
    %v585 = vmin.f32 %v247, %v415
    %v586 = vmin.f32 %v584, %v582
    %v587 = vmin.f32 %v585, %v583
    %v588 = vld [vmem:[%s7] sm:$0xff]
    %v589 = vld [vmem:[%s7 + $0x8] sm:$0xff]
    %v590 = vld [vmem:[%s7 + $0x10] sm:$0xff]
    %v591 = vld [vmem:[%s7 + $0x18] sm:$0xff]
    %v592 = vld [vmem:[%s7 + $0x20] sm:$0xff]
    %v593 = vld [vmem:[%s7 + $0x28] sm:$0xff]
    %v594 = vld [vmem:[%s7 + $0x30] sm:$0xff]
    %v595 = vld [vmem:[%s7 + $0x38] sm:$0xff]
    %vm596 = vcmask 523264
    %v598 = vsel %vm596, %v586, 0
    %v601 = vsel %vm596, %v587, 0
    %603 = vmatprep.subr.mxu0 0.0
    %604 = vmatpush1.msra.mxu0 %v588
    %605 = vmatprep.subr.mxu0 0.0
    %606 = vmatpush1.msra.mxu0 %v589
    %607 = vmatprep.subr.mxu0 0.0
    %608 = vmatpush1.msra.mxu0 %v590
    %609 = vmatprep.subr.mxu0 0.0
    %610 = vmatpush1.msra.mxu0 %v591
    %611 = vmatprep.subr.mxu0 0.0
    %612 = vmatpush1.msra.mxu0 %v592
    %613 = vmatprep.subr.mxu0 0.0
    %614 = vmatpush1.msra.mxu0 %v593
    %615 = vmatprep.subr.mxu0 0.0
    %616 = vmatpush1.msra.mxu0 %v594
    %617 = vmatprep.subr.mxu0 0.0
    %618 = vmatpush1.msra.mxu0 %v595
    %619 = vmatprep.subr.mxu0 0.0
    %620 = vmatpush1.msra.mxu0 0.0
    %621 = vmatprep.subr.mxu0 0.0
    %622 = vmatpush1.msra.mxu0 0.0
    %623 = vmatprep.subr.mxu0 0.0
    %624 = vmatpush1.msra.mxu0 0.0
    %625 = vmatprep.subr.mxu0 0.0
    %626 = vmatpush1.msra.mxu0 0.0
    %627 = vmatprep.subr.mxu0 0.0
    %628 = vmatpush1.msra.mxu0 0.0
    %629 = vmatprep.subr.mxu0 0.0
    %630 = vmatpush1.msra.mxu0 0.0
    %631 = vmatprep.subr.mxu0 0.0
    %632 = vmatpush1.msra.mxu0 0.0
    %633 = vmatprep.subr.mxu0 0.0
    %634 = vmatpush1.msra.mxu0 0.0
    %635 = vmatprep.subr.mxu0 0.0
    %636 = vmatpush1.msra.mxu0 0.0
    %637 = vmatprep.subr.mxu0 0.0
    %638 = vmatpush1.msra.mxu0 0.0
    %639 = vmatprep.subr.mxu0 0.0
    %640 = vmatpush1.msra.mxu0 0.0
    %641 = vmatprep.subr.mxu0 0.0
    %642 = vmatpush1.msra.mxu0 0.0
    %643 = vmatprep.subr.mxu0 0.0
    %644 = vmatpush1.msra.mxu0 0.0
    %645 = vmatprep.subr.mxu0 0.0
    %646 = vmatpush1.msra.mxu0 0.0
    %647 = vmatprep.subr.mxu0 0.0
    %648 = vmatpush1.msra.mxu0 0.0
    %649 = vmatprep.subr.mxu0 0.0
    %650 = vmatpush1.msra.mxu0 0.0
    %651 = vmatprep.subr.mxu0 0.0
    %652 = vmatpush1.msra.mxu0 0.0
    %653 = vmatprep.subr.mxu0 0.0
    %654 = vmatpush1.msra.mxu0 0.0
    %655 = vmatprep.subr.mxu0 0.0
    %656 = vmatpush1.msra.mxu0 0.0
    %657 = vmatprep.subr.mxu0 0.0
    %658 = vmatpush1.msra.mxu0 0.0
    %659 = vmatprep.subr.mxu0 0.0
    %660 = vmatpush1.msra.mxu0 0.0
    %661 = vmatprep.subr.mxu0 0.0
    %662 = vmatpush1.msra.mxu0 0.0
    %663 = vmatprep.subr.mxu0 0.0
    %664 = vmatpush1.msra.mxu0 0.0
    %665 = vmatprep.subr.mxu0 0.0
    %666 = vmatpush1.msra.mxu0 0.0
    %667 = vmatprep.mubr.f32.mxu0 0.0
    %668 = vmatmul.mubr.f32.gmra.mrb[0].mxu0 %v598
    %v669 = vpop.f32.mrb[0].mxu0
    %v670 = vadd.f32 0.0, %v669
    %v671 = vpop.f32.mrb[0].mxu0
    %672 = vmatprep.mubr.f32.mxu0 0.0
    %673 = vmatmul.mubr.f32.gmra.mrb[0].mxu0 %v601
    %v674 = vpop.f32.mrb[0].mxu0
    %v675 = vadd.f32 0.0, %v674
    %v676 = vpop.f32.mrb[0].mxu0
    %677 = vdwg.mxu0
    %678 = vst.msk [vmem:[#allocation8] sm:$0xff] %vm83, %v670
    %679 = vst.msk [vmem:[#allocation8 + $0x8] sm:$0xff] %vm83, %v675
    // Predicated region
    $region46: #{tpu_custom_call.1} parent=1 // pred_check
      _
    $region47: #{tpu_custom_call.1} parent=1 // pred_check_branch
      %681 = sbr.rel (0) target = $region49
    $region48: #{tpu_custom_call.1} parent=1 // pred_region
      %s683 = ssub.s32 256, 256
      %684 = vsyncadd [#allocation4], %s683
      %s685 = sshll.u32 [#allocation8], 4
      %s686 = int_to_ptr.vmem [resolvable:$true] %s685
      %691 = dma.vmem_to_hbm [thread:$0]  %s686, 256, %s8, [#allocation4], 128, 128, 8
    $region49: #{tpu_custom_call.1} parent=1 // pred_fallthru
      _
    // Predicated region
    $region50: #{tpu_custom_call.1} parent=1 // pred_check
      _
    $region51: #{tpu_custom_call.1} parent=1 // pred_check_branch
      %693 = sbr.rel (0) target = $region53
    $region52: #{tpu_custom_call.1} parent=1 // pred_region
      %694 = dma.done [#allocation4], 256
    $region53: #{tpu_custom_call.1} parent=1 // pred_fallthru
      _
    %695 = vsyncpa [#allocation3], 1
    %696 = vsyncpa [#allocation6], 1
    %697 = vsyncpa [#allocation4], 1

</llo_original>
